<compile_context>
chip_gen: v7x
topology: tpu7x:2x2x1
jax: 0.10.0
libtpu: 0.0.40
codegen_flags: <defaults>
</compile_context>

<pallas_src>
from functools import partial

import jax
import jax.numpy as jnp
from jax.experimental import pallas as pl
from jax.experimental.pallas import tpu as pltpu

_NEG_BIG = -1e30  # bias for padded class lanes -> exp underflows to exactly 0


def _round_up(x, m):
    return (x + m - 1) // m * m


def _cdiv(a, b):
    return (a + b - 1) // b


def entailment_kernel(x_ref, w1t_ref, b1_ref, w2at_ref, w2bt_ref, b2_ref, out_ref, acc_ref):
    """One (batch-tile i, hidden-chunk j) grid step.

    x_ref    : [2, TB, H]   both input branches, compute dtype (resident across j)
    w1t_ref  : [H, Hc]      fc1 weight (transposed), current hidden chunk
    b1_ref   : [1, Hc]      fc1 bias chunk (compute dtype)
    w2at_ref : [Hc, CPAD]   fc2 weight for the h1 half (transposed, class-padded)
    w2bt_ref : [Hc, CPAD]   fc2 weight for the h2 half
    b2_ref   : [1, CPAD]    fc2 bias (f32), padded lanes = -1e30
    out_ref  : [TB, CPAD]   softmax probabilities (padded)
    acc_ref  : [TB, CPAD]   f32 logits accumulator (VMEM scratch)
    """
    j = pl.program_id(1)
    nk = pl.num_programs(1)
    tb = out_ref.shape[0]
    h_in = x_ref.shape[2]

    @pl.when(j == 0)
    def _():
        acc_ref[...] = jnp.zeros_like(acc_ref)

    # ---- fc1 chunk: one fused MXU dot over both branches ([2*TB, H] @ [H, Hc]) ----------
    x = x_ref[...].reshape(2 * tb, h_in)                 # leading-dim collapse (no copy)
    h = jnp.dot(x, w1t_ref[...], preferred_element_type=jnp.float32)
    # bias + ReLU epilogue in the compute dtype (bf16 halves VPU passes on v6e/v7x)
    h = jnp.maximum(h.astype(x_ref.dtype) + b1_ref[...], 0).astype(x_ref.dtype)
    h1 = h[:tb]
    h2 = h[tb:]

    # ---- fc2 on the (virtual) concat: accumulate h1 @ W2a.T + h2 @ W2b.T ----------------
    acc_ref[...] += (jnp.dot(h1, w2at_ref[...], preferred_element_type=jnp.float32)
                     + jnp.dot(h2, w2bt_ref[...], preferred_element_type=jnp.float32))

    # ---- last hidden chunk: bias, numerically-stable softmax, store ---------------------
    @pl.when(j == nk - 1)
    def _():
        logits = acc_ref[...] + b2_ref[...]              # padded class lanes -> -1e30
        m = jnp.max(logits, axis=1, keepdims=True)
        e = jnp.exp(logits - m)
        s = jnp.sum(e, axis=1, keepdims=True)
        out_ref[...] = (e * pl.reciprocal(s, approx=True)).astype(out_ref.dtype)


def prepare_params(params, compute_dtype=jnp.bfloat16):
    """One-time weight prep: transpose / split / pad / cast (hoisted off the call path)."""
    fc1_w, fc1_b = params["fc1_w"], params["fc1_b"]
    fc2_w, fc2_b = params["fc2_w"], params["fc2_b"]
    H = fc1_w.shape[1]
    C = fc2_w.shape[0]
    cpad = max(128, _round_up(C, 128))

    w1t = fc1_w.T.astype(compute_dtype)                                   # [H, H]
    b1 = fc1_b.reshape(1, H).astype(compute_dtype)                        # [1, H]
    w2at = jnp.zeros((H, cpad), compute_dtype).at[:, :C].set(fc2_w[:, :H].T.astype(compute_dtype))
    w2bt = jnp.zeros((H, cpad), compute_dtype).at[:, :C].set(fc2_w[:, H:].T.astype(compute_dtype))
    b2 = jnp.full((1, cpad), _NEG_BIG, jnp.float32).at[0, :C].set(fc2_b.astype(jnp.float32))
    return {"w1t": w1t, "b1": b1, "w2at": w2at, "w2bt": w2bt, "b2": b2}


def _vmem_budget_bytes():
    """~7/8 of physical VMEM: ~56 MiB on v7x, ~112 MiB on v5e/v6e."""
    try:
        cap = int(pltpu.get_tpu_info().vmem_capacity_bytes)
    except Exception:
        cap = 64 * 1024 * 1024
    return cap * 7 // 8


def _vmem_estimate(H, Hc, cpad, tb, itemsize, oitem):
    """Weights + activations + in-kernel intermediates for one pipelined step."""
    nk = H // Hc
    wbuf = 1 if nk == 1 else 2          # resident weights are single-buffered
    weights = wbuf * (H * Hc + Hc + 2 * Hc * cpad) * itemsize + cpad * 4
    acts = (2 * (2 * tb * H) * itemsize          # x tile (double-buffered)
            + 2 * tb * cpad * oitem              # out tile (double-buffered)
            + tb * cpad * 4                      # f32 logits scratch
            + 2 * tb * Hc * (4 + itemsize)       # h in f32 + compute dtype
            + 2 * tb * H * itemsize              # possible reshape copy of x
            + 3 * tb * cpad * 4)                 # softmax temporaries
    return weights + acts


def _spec(shape, index_map, *, single_buffer=False):
    if single_buffer:
        try:    # grid-invariant block: one VMEM buffer is enough
            return pl.BlockSpec(shape, index_map, pipeline_mode=pl.Buffered(1))
        except Exception:
            pass  # older JAX without pipeline_mode: fall back to default double-buffering
    return pl.BlockSpec(shape, index_map)


def entailment_classifier(x1, x2, prepared, *, num_classes, tile_b=256,
                          out_dtype=jnp.float32, hidden_chunk=None):
    """Forward pass.  prepared = prepare_params(params).  Returns probs [B, num_classes]."""
    w1t, b1 = prepared["w1t"], prepared["b1"]
    w2at, w2bt, b2 = prepared["w2at"], prepared["w2bt"], prepared["b2"]
    B, H = x1.shape
    cpad = w2at.shape[1]
    cdt = w1t.dtype
    itemsize = jnp.dtype(cdt).itemsize
    oitem = jnp.dtype(out_dtype).itemsize

    # ---- batch tiling: balanced tiles, rounded to the sublane pack ----------------------
    pack = max(8, 32 // itemsize, 32 // oitem)   # 8 for f32, 16 for bf16
    n_tiles = _cdiv(B, tile_b)
    if n_tiles == 1 and B >= 2 * pack:
        n_tiles = 2                              # give both v7x TensorCores a batch tile
    tb = _round_up(_cdiv(B, n_tiles), pack)
    bp = _round_up(B, tb)
    nb = bp // tb

    # ---- hidden-dim chunking (keeps large-H weights inside the VMEM budget) -------------
    budget = _vmem_budget_bytes()
    if hidden_chunk is None:
        Hc = H
        if _vmem_estimate(H, H, cpad, tb, itemsize, oitem) > budget and H % 128 == 0:
            units = H // 128
            for k in range(2, units + 1):
                if units % k:
                    continue
                if _vmem_estimate(H, H // k, cpad, tb, itemsize, oitem) <= budget:
                    Hc = H // k
                    break
            else:
                Hc = 128  # TODO(synk): also shrink tb if even Hc=128 exceeds the budget
    else:
        Hc = int(hidden_chunk)
    assert H % Hc == 0 and (Hc == H or Hc % 128 == 0), (H, Hc)
    nk = H // Hc
    resident = nk == 1

    # ---- inputs: stack the two branches (cast/pad/stack fused by XLA, not per-step) -----
    x = jnp.stack([x1.astype(cdt), x2.astype(cdt)], axis=0)        # [2, B, H]
    if bp != B:
        x = jnp.pad(x, ((0, 0), (0, bp - B), (0, 0)))

    # ---- advisory cost estimate ----------------------------------------------------------
    weight_bytes = (H * H + 2 * H * cpad + H) * itemsize + cpad * 4
    weight_reads = 1 if resident else nb
    cost = pl.CostEstimate(
        flops=4 * bp * H * H + 4 * bp * H * cpad,
        transcendentals=bp * cpad + bp,
        bytes_accessed=(2 * bp * H * itemsize
                        + weight_bytes * weight_reads
                        + bp * cpad * oitem),
    )

    out_padded = pl.pallas_call(
        entailment_kernel,
        out_shape=jax.ShapeDtypeStruct((bp, cpad), out_dtype),
        grid_spec=pltpu.PrefetchScalarGridSpec(
            num_scalar_prefetch=0,
            grid=(nb, nk),
            in_specs=[
                # TODO(synk): sweep pl.Buffered(3) on x/out in the small-H mem-bound regime.
                pl.BlockSpec((2, tb, H), lambda i, j: (0, i, 0)),                   # x
                _spec((H, Hc), lambda i, j: (0, j), single_buffer=resident),        # w1t
                _spec((1, Hc), lambda i, j: (0, j), single_buffer=resident),        # b1
                _spec((Hc, cpad), lambda i, j: (j, 0), single_buffer=resident),     # w2at
                _spec((Hc, cpad), lambda i, j: (j, 0), single_buffer=resident),     # w2bt
                _spec((1, cpad), lambda i, j: (0, 0), single_buffer=True),          # b2
            ],
            out_specs=pl.BlockSpec((tb, cpad), lambda i, j: (i, 0)),
            scratch_shapes=[pltpu.VMEM((tb, cpad), jnp.float32)],
        ),
        compiler_params=pltpu.CompilerParams(
            dimension_semantics=("parallel", "arbitrary"),
            vmem_limit_bytes=int(budget),
        ),
        cost_estimate=cost,
    )(x, w1t, b1, w2at, w2bt, b2)

    return out_padded[:B, :num_classes]


def init_params(key, hidden_size, num_classes=3):
    """Deterministic init matching nn.Linear default: U(-1/sqrt(fan_in), 1/sqrt(fan_in))."""
    k1, k2, k3, k4 = jax.random.split(key, 4)
    bound1 = 1.0 / jnp.sqrt(hidden_size)
    bound2 = 1.0 / jnp.sqrt(2 * hidden_size)
    return {
        "fc1_w": jax.random.uniform(k1, (hidden_size, hidden_size), jnp.float32, -bound1, bound1),
        "fc1_b": jax.random.uniform(k2, (hidden_size,), jnp.float32, -bound1, bound1),
        "fc2_w": jax.random.uniform(k3, (num_classes, 2 * hidden_size), jnp.float32, -bound2, bound2),
        "fc2_b": jax.random.uniform(k4, (num_classes,), jnp.float32, -bound2, bound2),
    }


def reference(x1, x2, params):
    h1 = jnp.maximum(x1 @ params["fc1_w"].T + params["fc1_b"], 0.0)
    h2 = jnp.maximum(x2 @ params["fc1_w"].T + params["fc1_b"], 0.0)
    h = jnp.concatenate([h1, h2], axis=1)
    logits = h @ params["fc2_w"].T + params["fc2_b"]
    return jax.nn.softmax(logits, axis=1)


if __name__ == "__main__":
    # --- Test 1: tiny shapes, f32 compute, resident weights, f32 output ------------------
    B, H, C = 2, 32, 3
    kx1, kx2, kp = jax.random.split(jax.random.PRNGKey(0), 3)
    x1 = jax.random.normal(kx1, (B, H), jnp.float32)
    x2 = jax.random.normal(kx2, (B, H), jnp.float32)
    params = init_params(kp, H, C)
    ref = reference(x1, x2, params)

    fwd_f32 = jax.jit(partial(entailment_classifier, num_classes=C, out_dtype=jnp.float32))
    out_f32 = fwd_f32(x1, x2, prepare_params(params, jnp.float32))
    jax.block_until_ready(out_f32)
    assert out_f32.shape == (B, C)
    assert jnp.allclose(out_f32, ref, atol=1e-2, rtol=1e-2), float(jnp.max(jnp.abs(out_f32 - ref)))

    # --- Test 2: bf16 MXU fast path (f32 accumulation), bf16 output ----------------------
    fwd_bf16 = jax.jit(partial(entailment_classifier, num_classes=C, out_dtype=jnp.bfloat16))
    out_bf16 = fwd_bf16(x1, x2, prepare_params(params, jnp.bfloat16))
    jax.block_until_ready(out_bf16)
    assert out_bf16.shape == (B, C)
    assert jnp.allclose(out_bf16.astype(jnp.float32), ref, atol=3e-2, rtol=3e-2), \
        float(jnp.max(jnp.abs(out_bf16.astype(jnp.float32) - ref)))

    # --- Test 3: hidden-dim chunked path (nk=2) + multiple batch tiles (nb=2) ------------
    B2, H2 = 64, 256
    k1, k2, k3 = jax.random.split(jax.random.PRNGKey(1), 3)
    y1 = jax.random.normal(k1, (B2, H2), jnp.float32)
    y2 = jax.random.normal(k2, (B2, H2), jnp.float32)
    params2 = init_params(k3, H2, C)
    ref2 = reference(y1, y2, params2)
    fwd_chunk = jax.jit(partial(entailment_classifier, num_classes=C, tile_b=32,
                                out_dtype=jnp.bfloat16, hidden_chunk=128))
    out_chunk = fwd_chunk(y1, y2, prepare_params(params2, jnp.bfloat16))
    jax.block_until_ready(out_chunk)
    assert out_chunk.shape == (B2, C)
    assert jnp.allclose(out_chunk.astype(jnp.float32), ref2, atol=3e-2, rtol=3e-2), \
        float(jnp.max(jnp.abs(out_chunk.astype(jnp.float32) - ref2)))

    print("KERNEL_OK")
</pallas_src>

<mosaic_0001>
module attributes {stable_mosaic.version = 11 : i64} {
  func.func @entailment_kernel(%arg0: i32, %arg1: i32, %arg2: memref<2x8x32xf32, #tpu.memory_space<vmem>>, %arg3: memref<32x32xf32, #tpu.memory_space<vmem>>, %arg4: memref<1x32xf32, #tpu.memory_space<vmem>>, %arg5: memref<32x128xf32, #tpu.memory_space<vmem>>, %arg6: memref<32x128xf32, #tpu.memory_space<vmem>>, %arg7: memref<1x128xf32, #tpu.memory_space<vmem>>, %arg8: memref<8x128xf32, #tpu.memory_space<vmem>>, %arg9: memref<8x128xf32, #tpu.memory_space<vmem>>) attributes {dimension_semantics = [#tpu.dimension_semantics<parallel>, #tpu.dimension_semantics<arbitrary>], iteration_bounds = array<i64: 1, 1>, scalar_prefetch = 0 : i64, scratch_operands = 1 : i64, tpu.core_type = #tpu.core_type<tc>, window_params = [{transform_indices = @transform_0, window_bounds = array<i64: 2, 8, 32>}, {pipeline_mode = #tpu.pipeline_mode<synchronous>, transform_indices = @transform_1, window_bounds = array<i64: 32, 32>}, {pipeline_mode = #tpu.pipeline_mode<synchronous>, transform_indices = @transform_2, window_bounds = array<i64: 1, 32>}, {pipeline_mode = #tpu.pipeline_mode<synchronous>, transform_indices = @transform_3, window_bounds = array<i64: 32, 128>}, {pipeline_mode = #tpu.pipeline_mode<synchronous>, transform_indices = @transform_4, window_bounds = array<i64: 32, 128>}, {pipeline_mode = #tpu.pipeline_mode<synchronous>, transform_indices = @transform_5, window_bounds = array<i64: 1, 128>}, {transform_indices = @transform_6, window_bounds = array<i64: 8, 128>}]} {
    %c0_i32 = arith.constant 0 : i32
    %0 = arith.cmpi eq, %arg1, %c0_i32 : i32
    %1 = arith.extui %0 : i1 to i32
    %c0_i32_0 = arith.constant 0 : i32
    %2 = arith.cmpi ne, %1, %c0_i32_0 : i32
    scf.if %2 {
      %cst_20 = arith.constant 0.000000e+00 : f32
      %25 = vector.broadcast %cst_20 : f32 to vector<8x128xf32>
      %c0_21 = arith.constant 0 : index
      %c0_22 = arith.constant 0 : index
      %26 = vector.load %arg9[%c0_21, %c0_22] : memref<8x128xf32, #tpu.memory_space<vmem>>, vector<8x128xf32>
      tpu.vector_store %arg9[%c0_21, %c0_22], %25 {strides = array<i32>} : memref<8x128xf32, #tpu.memory_space<vmem>>, vector<8x128xf32>,
    } else {
    }
    %c0 = arith.constant 0 : index
    %c0_1 = arith.constant 0 : index
    %c0_2 = arith.constant 0 : index
    %3 = vector.load %arg2[%c0, %c0_1, %c0_2] : memref<2x8x32xf32, #tpu.memory_space<vmem>>, vector<2x8x32xf32>
    %4 = vector.shape_cast %3 : vector<2x8x32xf32> to vector<16x32xf32>
    %c0_3 = arith.constant 0 : index
    %c0_4 = arith.constant 0 : index
    %5 = vector.load %arg3[%c0_3, %c0_4] : memref<32x32xf32, #tpu.memory_space<vmem>>, vector<32x32xf32>
    %cst = arith.constant dense<0.000000e+00> : vector<16x32xf32>
    %6 = tpu.matmul %4, %5, %cst {dimension_numbers = #tpu.dot_dimension_numbers<[1], [0], [0], [1], [0, 0, 1, 1], [], []>} : vector<16x32xf32>, vector<32x32xf32>, vector<16x32xf32> -> vector<16x32xf32>
    %c0_5 = arith.constant 0 : index
    %c0_6 = arith.constant 0 : index
    %7 = vector.load %arg4[%c0_5, %c0_6] : memref<1x32xf32, #tpu.memory_space<vmem>>, vector<1x32xf32>
    %8 = vector.broadcast %7 : vector<1x32xf32> to vector<16x32xf32>
    %9 = arith.addf %6, %8 : vector<16x32xf32>
    %cst_7 = arith.constant 0.000000e+00 : f32
    %10 = vector.broadcast %cst_7 : f32 to vector<16x32xf32>
    %11 = arith.maximumf %9, %10 : vector<16x32xf32>
    %12 = vector.extract_strided_slice %11 {offsets = [0, 0], sizes = [8, 32], strides = [1, 1]} : vector<16x32xf32> to vector<8x32xf32>
    %13 = vector.extract_strided_slice %11 {offsets = [8, 0], sizes = [8, 32], strides = [1, 1]} : vector<16x32xf32> to vector<8x32xf32>
    %c0_8 = arith.constant 0 : index
    %c0_9 = arith.constant 0 : index
    %14 = vector.load %arg9[%c0_8, %c0_9] : memref<8x128xf32, #tpu.memory_space<vmem>>, vector<8x128xf32>
    %c0_10 = arith.constant 0 : index
    %c0_11 = arith.constant 0 : index
    %15 = vector.load %arg5[%c0_10, %c0_11] : memref<32x128xf32, #tpu.memory_space<vmem>>, vector<32x128xf32>
    %cst_12 = arith.constant dense<0.000000e+00> : vector<8x128xf32>
    %16 = tpu.matmul %12, %15, %cst_12 {dimension_numbers = #tpu.dot_dimension_numbers<[1], [0], [0], [1], [0, 0, 1, 1], [], []>} : vector<8x32xf32>, vector<32x128xf32>, vector<8x128xf32> -> vector<8x128xf32>
    %c0_13 = arith.constant 0 : index
    %c0_14 = arith.constant 0 : index
    %17 = vector.load %arg6[%c0_13, %c0_14] : memref<32x128xf32, #tpu.memory_space<vmem>>, vector<32x128xf32>
    %cst_15 = arith.constant dense<0.000000e+00> : vector<8x128xf32>
    %18 = tpu.matmul %13, %17, %cst_15 {dimension_numbers = #tpu.dot_dimension_numbers<[1], [0], [0], [1], [0, 0, 1, 1], [], []>} : vector<8x32xf32>, vector<32x128xf32>, vector<8x128xf32> -> vector<8x128xf32>
    %19 = arith.addf %16, %18 : vector<8x128xf32>
    %20 = arith.addf %14, %19 : vector<8x128xf32>
    %c0_16 = arith.constant 0 : index
    %c0_17 = arith.constant 0 : index
    %21 = vector.load %arg9[%c0_16, %c0_17] : memref<8x128xf32, #tpu.memory_space<vmem>>, vector<8x128xf32>
    tpu.vector_store %arg9[%c0_16, %c0_17], %20 {strides = array<i32>} : memref<8x128xf32, #tpu.memory_space<vmem>>, vector<8x128xf32>,
    %c0_i32_18 = arith.constant 0 : i32
    %22 = arith.cmpi eq, %arg1, %c0_i32_18 : i32
    %23 = arith.extui %22 : i1 to i32
    %c0_i32_19 = arith.constant 0 : i32
    %24 = arith.cmpi ne, %23, %c0_i32_19 : i32
    scf.if %24 {
      %c0_20 = arith.constant 0 : index
      %c0_21 = arith.constant 0 : index
      %25 = vector.load %arg9[%c0_20, %c0_21] : memref<8x128xf32, #tpu.memory_space<vmem>>, vector<8x128xf32>
      %c0_22 = arith.constant 0 : index
      %c0_23 = arith.constant 0 : index
      %26 = vector.load %arg7[%c0_22, %c0_23] : memref<1x128xf32, #tpu.memory_space<vmem>>, vector<1x128xf32>
      %27 = vector.broadcast %26 : vector<1x128xf32> to vector<8x128xf32>
      %28 = arith.addf %25, %27 : vector<8x128xf32>
      %cst_24 = arith.constant dense<0xFF800000> : vector<8xf32>
      %29 = vector.multi_reduction <maximumf>, %28, %cst_24 [1] : vector<8x128xf32> to vector<8xf32>
      %30 = vector.shape_cast %29 : vector<8xf32> to vector<8x1xf32>
      %31 = vector.broadcast %30 : vector<8x1xf32> to vector<8x128xf32>
      %32 = arith.subf %28, %31 : vector<8x128xf32>
      %33 = math.exp %32 : vector<8x128xf32>
      %cst_25 = arith.constant dense<0.000000e+00> : vector<8xf32>
      %34 = vector.multi_reduction <add>, %33, %cst_25 [1] : vector<8x128xf32> to vector<8xf32>
      %35 = vector.shape_cast %34 : vector<8xf32> to vector<8x1xf32>
      %36 = tpu.reciprocal %35 {approx = true} : vector<8x1xf32> -> vector<8x1xf32>
      %37 = vector.broadcast %36 : vector<8x1xf32> to vector<8x128xf32>
      %38 = arith.mulf %33, %37 : vector<8x128xf32>
      %c0_26 = arith.constant 0 : index
      %c0_27 = arith.constant 0 : index
      %39 = vector.load %arg8[%c0_26, %c0_27] : memref<8x128xf32, #tpu.memory_space<vmem>>, vector<8x128xf32>
      tpu.vector_store %arg8[%c0_26, %c0_27], %38 {strides = array<i32>} : memref<8x128xf32, #tpu.memory_space<vmem>>, vector<8x128xf32>,
    } else {
    }
    return
  }
  func.func @transform_0(%arg0: i32, %arg1: i32) -> (i32, i32, i32) {
    %c0_i32 = arith.constant 0 : i32
    %c0_i32_0 = arith.constant 0 : i32
    %c0_i32_1 = arith.constant 0 : i32
    return %c0_i32, %arg0, %c0_i32_0 : i32, i32, i32
  }
  func.func @transform_1(%arg0: i32, %arg1: i32) -> (i32, i32) {
    %c0_i32 = arith.constant 0 : i32
    %c0_i32_0 = arith.constant 0 : i32
    return %c0_i32, %arg1 : i32, i32
  }
  func.func @transform_2(%arg0: i32, %arg1: i32) -> (i32, i32) {
    %c0_i32 = arith.constant 0 : i32
    %c0_i32_0 = arith.constant 0 : i32
    return %c0_i32, %arg1 : i32, i32
  }
  func.func @transform_3(%arg0: i32, %arg1: i32) -> (i32, i32) {
    %c0_i32 = arith.constant 0 : i32
    %c0_i32_0 = arith.constant 0 : i32
    return %arg1, %c0_i32 : i32, i32
  }
  func.func @transform_4(%arg0: i32, %arg1: i32) -> (i32, i32) {
    %c0_i32 = arith.constant 0 : i32
    %c0_i32_0 = arith.constant 0 : i32
    return %arg1, %c0_i32 : i32, i32
  }
  func.func @transform_5(%arg0: i32, %arg1: i32) -> (i32, i32) {
    %c0_i32 = arith.constant 0 : i32
    %c0_i32_0 = arith.constant 0 : i32
    %c0_i32_1 = arith.constant 0 : i32
    return %c0_i32, %c0_i32_0 : i32, i32
  }
  func.func @transform_6(%arg0: i32, %arg1: i32) -> (i32, i32) {
    %c0_i32 = arith.constant 0 : i32
    %c0_i32_0 = arith.constant 0 : i32
    return %arg0, %c0_i32 : i32, i32
  }
}

</mosaic_0001>

<llo_original>
// kernel: entailment_classifier.1
$region0: #{entailment_classifier.1}
  #allocation0 [shape = 'u32[]', space=smem, size = 0x4, offset = 0x4, fixed_abs, tag = 'smem constant byte address 0x4 - core index']
  #allocation1 [shape = 'u32[144,128]{1,0:T(1,128)}', space=vmem, size = 0x12000, scoped, tag = 'internal scratch']
  #allocation2 [shape = 'f32[8,128]{1,0:T(8,128)}', space=vmem, size = 0x1000, scoped, tag = 'scratch operand']
  %s0 = inlined_call_operand.vmem [shape: f32[2,8,32], index: 0, kind: input, shape index: {}]
  %s1 = inlined_call_operand.vmem [shape: f32[32,32], index: 1, kind: input, shape index: {}]
  %s2 = inlined_call_operand.vmem [shape: f32[1,32], index: 2, kind: input, shape index: {}]
  %s3 = inlined_call_operand.hbm [shape: f32[32,128], index: 3, kind: input, shape index: {}]
  %s4 = inlined_call_operand.hbm [shape: f32[32,128], index: 4, kind: input, shape index: {}]
  %s5 = inlined_call_operand.vmem [shape: f32[1,128], index: 5, kind: input, shape index: {}]
  %s6 = inlined_call_operand.vmem [shape: f32[8,128], index: 6, kind: output, shape index: {}]
  %s7 = sld [smem:[#allocation0]]
  $region50: #{entailment_classifier.1} parent=0
    _
  %s9 = ssub.s32 1, %s7
  %s10 = scalar_select 0, %s9, %s7
  $region1: #{entailment_classifier.1} parent=0
    #allocation3 [shape = 'u8[16384]{0}', space=vmem, size = 0x4000, scoped, tag = 'input window, operand 3, single buffered']
    #allocation4 [shape = 's32[1]{0}', space=sflag, size = 0x4, scoped, tag = 'scoped memory for entailment_classifier.1']
    #allocation5 [shape = 'u8[16384]{0}', space=vmem, size = 0x4000, scoped, tag = 'input window, operand 4, single buffered']
    #allocation6 [shape = 's32[1]{0}', space=sflag, size = 0x4, scoped, tag = 'scoped memory for entailment_classifier.1']
    %11 = vsyncpa [#allocation4], 0
    %12 = vsyncpa [#allocation6], 0
    // Predicated region
    $region2: #{entailment_classifier.1} parent=1 // pred_check
      _
    $region3: #{entailment_classifier.1} parent=1 // pred_check_branch
      %14 = sbr.rel (0) target = $region5
    $region4: #{entailment_classifier.1} parent=1 // pred_region
      _
    $region5: #{entailment_classifier.1} parent=1 // pred_fallthru
      _
    // Predicated region
    $region6: #{entailment_classifier.1} parent=1 // pred_check
      _
    $region7: #{entailment_classifier.1} parent=1 // pred_check_branch
      %16 = sbr.rel (0) target = $region9
    $region8: #{entailment_classifier.1} parent=1 // pred_region
      _
    $region9: #{entailment_classifier.1} parent=1 // pred_fallthru
      _
    // Predicated region
    $region10: #{entailment_classifier.1} parent=1 // pred_check
      _
    $region11: #{entailment_classifier.1} parent=1 // pred_check_branch
      %18 = sbr.rel (0) target = $region13
    $region12: #{entailment_classifier.1} parent=1 // pred_region
      _
    $region13: #{entailment_classifier.1} parent=1 // pred_fallthru
      _
    // Predicated region
    $region14: #{entailment_classifier.1} parent=1 // pred_check
      _
    $region15: #{entailment_classifier.1} parent=1 // pred_check_branch
      %20 = sbr.rel (0) target = $region17
    $region16: #{entailment_classifier.1} parent=1 // pred_region
      %s22 = ssub.s32 512, 512
      %23 = vsyncadd [#allocation4], %s22
      %s24 = sshll.u32 [#allocation3], 4
      %s25 = int_to_ptr.vmem [resolvable:$true] %s24
      %30 = dma.hbm_to_vmem [thread:$0]  %s3, 512, %s25, [#allocation4], 128, 128, 8
    $region17: #{entailment_classifier.1} parent=1 // pred_fallthru
      _
    // Predicated region
    $region18: #{entailment_classifier.1} parent=1 // pred_check
      _
    $region19: #{entailment_classifier.1} parent=1 // pred_check_branch
      %32 = sbr.rel (0) target = $region21
    $region20: #{entailment_classifier.1} parent=1 // pred_region
      %s34 = ssub.s32 512, 512
      %35 = vsyncadd [#allocation6], %s34
      %s36 = sshll.u32 [#allocation5], 4
      %s37 = int_to_ptr.vmem [resolvable:$true] %s36
      %42 = dma.hbm_to_vmem [thread:$0]  %s4, 512, %s37, [#allocation6], 128, 128, 8
    $region21: #{entailment_classifier.1} parent=1 // pred_fallthru
      _
    // Predicated region
    $region22: #{entailment_classifier.1} parent=1 // pred_check
      _
    $region23: #{entailment_classifier.1} parent=1 // pred_check_branch
      %44 = sbr.rel (0) target = $region25
    $region24: #{entailment_classifier.1} parent=1 // pred_region
      _
    $region25: #{entailment_classifier.1} parent=1 // pred_fallthru
      _
    // Predicated region
    $region26: #{entailment_classifier.1} parent=1 // pred_check
      _
    $region27: #{entailment_classifier.1} parent=1 // pred_check_branch
      %46 = sbr.rel (0) target = $region29
    $region28: #{entailment_classifier.1} parent=1 // pred_region
      %47 = dma.done [#allocation4], 512
    $region29: #{entailment_classifier.1} parent=1 // pred_fallthru
      _
    // Predicated region
    $region30: #{entailment_classifier.1} parent=1 // pred_check
      _
    $region31: #{entailment_classifier.1} parent=1 // pred_check_branch
      %49 = sbr.rel (0) target = $region33
    $region32: #{entailment_classifier.1} parent=1 // pred_region
      %50 = dma.done [#allocation6], 512
    $region33: #{entailment_classifier.1} parent=1 // pred_fallthru
      _
    %p51 = scmp.eq.s32.totalorder 0, 0
    // Predicated region
    $region34: #{entailment_classifier.1} parent=1 // pred_check
      %p52 = pneg %p51
    $region35: #{entailment_classifier.1} parent=1 // pred_check_branch
      %54 = sbr.rel (%p52) target = $region37
    $region36: #{entailment_classifier.1} parent=1 // pred_region
      %55 = vst [vmem:[#allocation2] sm:$0xff] 0.0
    $region37: #{entailment_classifier.1} parent=1 // pred_fallthru
      _
    %v56 = vld [vmem:[%s0] sm:$0xff]
    %v57 = vld [vmem:[%s0 + $0x8] sm:$0xff]
    %v58 = vld [vmem:[%s1] sm:$0xff]
    %v59 = vld [vmem:[%s1 + $0x8] sm:$0xff]
    %v60 = vld [vmem:[%s1 + $0x10] sm:$0xff]
    %v61 = vld [vmem:[%s1 + $0x18] sm:$0xff]
    %v62 = vld [vmem:[%s2] sm:$0x1]
    %v64 = vlaneseq
    %v65 = vshrl.u32 %v64, 7
    %v66 = vsub.s32 0, %v65
    %v67 = vrot.slane %v62, %v66
    %vm69 = vcmask 261120
    %v71 = vsel %vm69, %v56, 0
    %v74 = vsel %vm69, %v57, 0
    %76 = vmatprep.subr.mxu0 0.0
    %77 = vmatpush1.msra.mxu0 %v58
    %78 = vmatprep.subr.mxu0 0.0
    %79 = vmatpush1.msra.mxu0 %v59
    %80 = vmatprep.subr.mxu0 0.0
    %81 = vmatpush1.msra.mxu0 %v60
    %82 = vmatprep.subr.mxu0 0.0
    %83 = vmatpush1.msra.mxu0 %v61
    %84 = vmatprep.subr.mxu0 0.0
    %85 = vmatpush1.msra.mxu0 0.0
    %86 = vmatprep.subr.mxu0 0.0
    %87 = vmatpush1.msra.mxu0 0.0
    %88 = vmatprep.subr.mxu0 0.0
    %89 = vmatpush1.msra.mxu0 0.0
    %90 = vmatprep.subr.mxu0 0.0
    %91 = vmatpush1.msra.mxu0 0.0
    %92 = vmatprep.subr.mxu0 0.0
    %93 = vmatpush1.msra.mxu0 0.0
    %94 = vmatprep.subr.mxu0 0.0
    %95 = vmatpush1.msra.mxu0 0.0
    %96 = vmatprep.subr.mxu0 0.0
    %97 = vmatpush1.msra.mxu0 0.0
    %98 = vmatprep.subr.mxu0 0.0
    %99 = vmatpush1.msra.mxu0 0.0
    %100 = vmatprep.subr.mxu0 0.0
    %101 = vmatpush1.msra.mxu0 0.0
    %102 = vmatprep.subr.mxu0 0.0
    %103 = vmatpush1.msra.mxu0 0.0
    %104 = vmatprep.subr.mxu0 0.0
    %105 = vmatpush1.msra.mxu0 0.0
    %106 = vmatprep.subr.mxu0 0.0
    %107 = vmatpush1.msra.mxu0 0.0
    %108 = vmatprep.subr.mxu0 0.0
    %109 = vmatpush1.msra.mxu0 0.0
    %110 = vmatprep.subr.mxu0 0.0
    %111 = vmatpush1.msra.mxu0 0.0
    %112 = vmatprep.subr.mxu0 0.0
    %113 = vmatpush1.msra.mxu0 0.0
    %114 = vmatprep.subr.mxu0 0.0
    %115 = vmatpush1.msra.mxu0 0.0
    %116 = vmatprep.subr.mxu0 0.0
    %117 = vmatpush1.msra.mxu0 0.0
    %118 = vmatprep.subr.mxu0 0.0
    %119 = vmatpush1.msra.mxu0 0.0
    %120 = vmatprep.subr.mxu0 0.0
    %121 = vmatpush1.msra.mxu0 0.0
    %122 = vmatprep.subr.mxu0 0.0
    %123 = vmatpush1.msra.mxu0 0.0
    %124 = vmatprep.subr.mxu0 0.0
    %125 = vmatpush1.msra.mxu0 0.0
    %126 = vmatprep.subr.mxu0 0.0
    %127 = vmatpush1.msra.mxu0 0.0
    %128 = vmatprep.subr.mxu0 0.0
    %129 = vmatpush1.msra.mxu0 0.0
    %130 = vmatprep.subr.mxu0 0.0
    %131 = vmatpush1.msra.mxu0 0.0
    %132 = vmatprep.subr.mxu0 0.0
    %133 = vmatpush1.msra.mxu0 0.0
    %134 = vmatprep.subr.mxu0 0.0
    %135 = vmatpush1.msra.mxu0 0.0
    %136 = vmatprep.subr.mxu0 0.0
    %137 = vmatpush1.msra.mxu0 0.0
    %138 = vmatprep.subr.mxu0 0.0
    %139 = vmatpush1.msra.mxu0 0.0
    %140 = vmatprep.mubr.f32.mxu0 0.0
    %141 = vmatmul.mubr.f32.gmra.mrb[0].mxu0 %v71
    %v142 = vpop.f32.mrb[0].mxu0
    %v143 = vadd.f32 %v67, %v142
    %v144 = vpop.f32.mrb[0].mxu0
    %145 = vmatprep.mubr.f32.mxu0 0.0
    %146 = vmatmul.mubr.f32.gmra.mrb[0].mxu0 %v74
    %v147 = vpop.f32.mrb[0].mxu0
    %v148 = vadd.f32 %v67, %v147
    %v149 = vpop.f32.mrb[0].mxu0
    %150 = vdwg.mxu0
    %v151 = vmax.f32 %v143, 0.0
    %v152 = vmax.f32 %v148, 0.0
    %v153 = vld [vmem:[#allocation2] sm:$0xff]
    %v154 = vld [vmem:[#allocation3] sm:$0xff]
    %v155 = vld [vmem:[#allocation3 + $0x8] sm:$0xff]
    %v156 = vld [vmem:[#allocation3 + $0x10] sm:$0xff]
    %v157 = vld [vmem:[#allocation3 + $0x18] sm:$0xff]
    %v158 = vld [vmem:[#allocation5] sm:$0xff]
    %v159 = vld [vmem:[#allocation5 + $0x8] sm:$0xff]
    %v160 = vld [vmem:[#allocation5 + $0x10] sm:$0xff]
    %v161 = vld [vmem:[#allocation5 + $0x18] sm:$0xff]
    %v163 = vsel %vm69, %v152, 0
    %165 = vmatprep.subr.mxu0 0.0
    %166 = vmatpush1.msra.mxu0 %v158
    %167 = vmatprep.subr.mxu0 0.0
    %168 = vmatpush1.msra.mxu0 %v159
    %169 = vmatprep.subr.mxu0 0.0
    %170 = vmatpush1.msra.mxu0 %v160
    %171 = vmatprep.subr.mxu0 0.0
    %172 = vmatpush1.msra.mxu0 %v161
    %173 = vmatprep.subr.mxu0 0.0
    %174 = vmatpush1.msra.mxu0 0.0
    %175 = vmatprep.subr.mxu0 0.0
    %176 = vmatpush1.msra.mxu0 0.0
    %177 = vmatprep.subr.mxu0 0.0
    %178 = vmatpush1.msra.mxu0 0.0
    %179 = vmatprep.subr.mxu0 0.0
    %180 = vmatpush1.msra.mxu0 0.0
    %181 = vmatprep.subr.mxu0 0.0
    %182 = vmatpush1.msra.mxu0 0.0
    %183 = vmatprep.subr.mxu0 0.0
    %184 = vmatpush1.msra.mxu0 0.0
    %185 = vmatprep.subr.mxu0 0.0
    %186 = vmatpush1.msra.mxu0 0.0
    %187 = vmatprep.subr.mxu0 0.0
    %188 = vmatpush1.msra.mxu0 0.0
    %189 = vmatprep.subr.mxu0 0.0
    %190 = vmatpush1.msra.mxu0 0.0
    %191 = vmatprep.subr.mxu0 0.0
    %192 = vmatpush1.msra.mxu0 0.0
    %193 = vmatprep.subr.mxu0 0.0
    %194 = vmatpush1.msra.mxu0 0.0
    %195 = vmatprep.subr.mxu0 0.0
    %196 = vmatpush1.msra.mxu0 0.0
    %197 = vmatprep.subr.mxu0 0.0
    %198 = vmatpush1.msra.mxu0 0.0
    %199 = vmatprep.subr.mxu0 0.0
    %200 = vmatpush1.msra.mxu0 0.0
    %201 = vmatprep.subr.mxu0 0.0
    %202 = vmatpush1.msra.mxu0 0.0
    %203 = vmatprep.subr.mxu0 0.0
    %204 = vmatpush1.msra.mxu0 0.0
    %205 = vmatprep.subr.mxu0 0.0
    %206 = vmatpush1.msra.mxu0 0.0
    %207 = vmatprep.subr.mxu0 0.0
    %208 = vmatpush1.msra.mxu0 0.0
    %209 = vmatprep.subr.mxu0 0.0
    %210 = vmatpush1.msra.mxu0 0.0
    %211 = vmatprep.subr.mxu0 0.0
    %212 = vmatpush1.msra.mxu0 0.0
    %213 = vmatprep.subr.mxu0 0.0
    %214 = vmatpush1.msra.mxu0 0.0
    %215 = vmatprep.subr.mxu0 0.0
    %216 = vmatpush1.msra.mxu0 0.0
    %217 = vmatprep.subr.mxu0 0.0
    %218 = vmatpush1.msra.mxu0 0.0
    %219 = vmatprep.subr.mxu0 0.0
    %220 = vmatpush1.msra.mxu0 0.0
    %221 = vmatprep.subr.mxu0 0.0
    %222 = vmatpush1.msra.mxu0 0.0
    %223 = vmatprep.subr.mxu0 0.0
    %224 = vmatpush1.msra.mxu0 0.0
    %225 = vmatprep.subr.mxu0 0.0
    %226 = vmatpush1.msra.mxu0 0.0
    %227 = vmatprep.subr.mxu0 0.0
    %228 = vmatpush1.msra.mxu0 0.0
    %229 = vmatprep.mubr.f32.mxu0 0.0
    %230 = vmatmul.mubr.f32.gmra.mrb[0].mxu0 %v163
    %v231 = vpop.f32.mrb[0].mxu0
    %v232 = vadd.f32 0.0, %v231
    %v233 = vpop.f32.mrb[0].mxu0
    %234 = vdwg.mxu0
    %v236 = vsel %vm69, %v151, 0
    %238 = vmatprep.subr.mxu0 0.0
    %239 = vmatpush1.msra.mxu0 %v154
    %240 = vmatprep.subr.mxu0 0.0
    %241 = vmatpush1.msra.mxu0 %v155
    %242 = vmatprep.subr.mxu0 0.0
    %243 = vmatpush1.msra.mxu0 %v156
    %244 = vmatprep.subr.mxu0 0.0
    %245 = vmatpush1.msra.mxu0 %v157
    %246 = vmatprep.subr.mxu0 0.0
    %247 = vmatpush1.msra.mxu0 0.0
    %248 = vmatprep.subr.mxu0 0.0
    %249 = vmatpush1.msra.mxu0 0.0
    %250 = vmatprep.subr.mxu0 0.0
    %251 = vmatpush1.msra.mxu0 0.0
    %252 = vmatprep.subr.mxu0 0.0
    %253 = vmatpush1.msra.mxu0 0.0
    %254 = vmatprep.subr.mxu0 0.0
    %255 = vmatpush1.msra.mxu0 0.0
    %256 = vmatprep.subr.mxu0 0.0
    %257 = vmatpush1.msra.mxu0 0.0
    %258 = vmatprep.subr.mxu0 0.0
    %259 = vmatpush1.msra.mxu0 0.0
    %260 = vmatprep.subr.mxu0 0.0
    %261 = vmatpush1.msra.mxu0 0.0
    %262 = vmatprep.subr.mxu0 0.0
    %263 = vmatpush1.msra.mxu0 0.0
    %264 = vmatprep.subr.mxu0 0.0
    %265 = vmatpush1.msra.mxu0 0.0
    %266 = vmatprep.subr.mxu0 0.0
    %267 = vmatpush1.msra.mxu0 0.0
    %268 = vmatprep.subr.mxu0 0.0
    %269 = vmatpush1.msra.mxu0 0.0
    %270 = vmatprep.subr.mxu0 0.0
    %271 = vmatpush1.msra.mxu0 0.0
    %272 = vmatprep.subr.mxu0 0.0
    %273 = vmatpush1.msra.mxu0 0.0
    %274 = vmatprep.subr.mxu0 0.0
    %275 = vmatpush1.msra.mxu0 0.0
    %276 = vmatprep.subr.mxu0 0.0
    %277 = vmatpush1.msra.mxu0 0.0
    %278 = vmatprep.subr.mxu0 0.0
    %279 = vmatpush1.msra.mxu0 0.0
    %280 = vmatprep.subr.mxu0 0.0
    %281 = vmatpush1.msra.mxu0 0.0
    %282 = vmatprep.subr.mxu0 0.0
    %283 = vmatpush1.msra.mxu0 0.0
    %284 = vmatprep.subr.mxu0 0.0
    %285 = vmatpush1.msra.mxu0 0.0
    %286 = vmatprep.subr.mxu0 0.0
    %287 = vmatpush1.msra.mxu0 0.0
    %288 = vmatprep.subr.mxu0 0.0
    %289 = vmatpush1.msra.mxu0 0.0
    %290 = vmatprep.subr.mxu0 0.0
    %291 = vmatpush1.msra.mxu0 0.0
    %292 = vmatprep.subr.mxu0 0.0
    %293 = vmatpush1.msra.mxu0 0.0
    %294 = vmatprep.subr.mxu0 0.0
    %295 = vmatpush1.msra.mxu0 0.0
    %296 = vmatprep.subr.mxu0 0.0
    %297 = vmatpush1.msra.mxu0 0.0
    %298 = vmatprep.subr.mxu0 0.0
    %299 = vmatpush1.msra.mxu0 0.0
    %300 = vmatprep.subr.mxu0 0.0
    %301 = vmatpush1.msra.mxu0 0.0
    %302 = vmatprep.mubr.f32.mxu0 0.0
    %303 = vmatmul.mubr.f32.gmra.mrb[0].mxu0 %v236
    %v304 = vpop.f32.mrb[0].mxu0
    %v305 = vadd.f32 %v232, %v304
    %v306 = vpop.f32.mrb[0].mxu0
    %307 = vdwg.mxu0
    %v308 = vadd.f32 %v153, %v305
    %309 = vst [vmem:[#allocation2] sm:$0xff] %v308
    // Predicated region
    $region38: #{entailment_classifier.1} parent=1 // pred_check
      %p310 = pneg %p51
    $region39: #{entailment_classifier.1} parent=1 // pred_check_branch
      %312 = sbr.rel (%p310) target = $region41
    $region40: #{entailment_classifier.1} parent=1 // pred_region
      %v313 = vld [vmem:[#allocation2] sm:$0xff]
      %v314 = vld [vmem:[%s5] sm:$0x1]
      %v316 = vlaneseq
      %v317 = vshrl.u32 %v316, 7
      %v318 = vsub.s32 0, %v317
      %v319 = vrot.slane %v314, %v318
      %v321 = vadd.f32 %v313, %v319
      %322 = vmax.xlane.f32.xlu0 %v321
      %v323 = vpop.xlane.xlu0 %322
      %v324 = vsub.f32 %v321, %v323
      %v325 = vmul.f32 %v324, 1.442695
      %v326 = vpow.pop %v325
      %327 = vadd.xlane.f32.xlu0 %v326
      %v328 = vpop.xlane.xlu0 %327
      %v329 = vrcp.pop %v328
      %v330 = vmul.f32 %v326, %v329
      %331 = vst [vmem:[%s6] sm:$0xff] %v330
    $region41: #{entailment_classifier.1} parent=1 // pred_fallthru
      _
    // Predicated region
    $region42: #{entailment_classifier.1} parent=1 // pred_check
      _
    $region43: #{entailment_classifier.1} parent=1 // pred_check_branch
      %333 = sbr.rel (0) target = $region45
    $region44: #{entailment_classifier.1} parent=1 // pred_region
      _
    $region45: #{entailment_classifier.1} parent=1 // pred_fallthru
      _
    // Predicated region
    $region46: #{entailment_classifier.1} parent=1 // pred_check
      _
    $region47: #{entailment_classifier.1} parent=1 // pred_check_branch
      %335 = sbr.rel (0) target = $region49
    $region48: #{entailment_classifier.1} parent=1 // pred_region
      _
    $region49: #{entailment_classifier.1} parent=1 // pred_fallthru
      _
    %336 = vsyncpa [#allocation4], 1
    %337 = vsyncpa [#allocation6], 1

</llo_original>
